<compile_context>
chip_gen: v7x
topology: tpu7x:2x2x1
jax: 0.10.0
libtpu: 0.0.40
codegen_flags: <defaults>
</compile_context>

<pallas_src>
import functools

import jax
import jax.numpy as jnp
from jax.experimental import pallas as pl
from jax.experimental.pallas import tpu as pltpu

_MIB = 1024 * 1024


def _add_kernel(a_ref, b_ref, o_ref):
    # Elementwise add of the current VMEM tile (VPU).
    o_ref[...] = a_ref[...] + b_ref[...]


@functools.lru_cache(maxsize=None)
def _device_kind() -> str:
    try:
        return jax.devices()[0].device_kind.lower()
    except Exception:  # defensive: never fail just because of the probe
        return ""


def _tile_bytes() -> int:
    # v5e: 2 MiB/operand blocks already sit at the HBM roofline and VMEM
    # headroom is the constraint there.  v6e/v7x: 4 MiB/operand blocks
    # (3 operands x 2 pipeline buffers = 24 MiB, fits v7x's 64 MiB VMEM).
    return 2 * _MIB if "v5" in _device_kind() else 4 * _MIB


def _grid_semantics(grid_size: int):
    # Only CORE_PARALLEL actually splits the (otherwise sequential) grid across
    # v7x's two TensorCores; plain "parallel" vs "arbitrary" is a near no-op.
    # Gate on an even, >=2 grid and on a v7-looking device_kind so v5e/v6e (and
    # odd grids) keep the battle-tested "parallel" setting.
    kind = _device_kind()
    core_parallel = getattr(pltpu, "CORE_PARALLEL", None)
    if ("7" in kind) and core_parallel is not None and grid_size >= 2 and grid_size % 2 == 0:
        return (core_parallel,)
    return ("parallel",)


def _pallas_add_impl(a: jax.Array, b: jax.Array) -> jax.Array:
    assert a.shape == b.shape, "Add expects two same-shape tensors"
    assert a.dtype == b.dtype, "Add expects matching dtypes"

    orig_shape = a.shape
    dtype = a.dtype
    n = a.size
    itemsize = jnp.dtype(dtype).itemsize
    total_bytes = n * itemsize

    if n == 0:
        return jnp.zeros(orig_shape, dtype)

    cost = pl.CostEstimate(flops=n, transcendentals=0, bytes_accessed=3 * total_bytes)

    a_flat = a.reshape(-1)  # metadata-only for contiguous inputs
    b_flat = b.reshape(-1)

    # Widest lane count (multiple of 128) that divides the flattened size.
    lanes = 0
    for cand in (1024, 512, 256, 128):
        if n % cand == 0:
            lanes = cand
            break

    if lanes:
        # ---------------- lane-dense 2-D streaming path (zero-copy) ----------
        rows = n // lanes
        # Multiple of 32 rows => sublane-aligned for f32(8)/bf16(16)/int8(32).
        tile_rows = max(32, (_tile_bytes() // (lanes * itemsize)) // 32 * 32)
        if rows <= tile_rows:
            block_rows = rows          # single full-array block (full dim OK)
            grid = (1,)
        else:
            block_rows = tile_rows     # ragged last row-block is masked by Pallas
            grid = (pl.cdiv(rows, tile_rows),)

        block_bytes = block_rows * lanes * itemsize
        vmem_limit = min(48 * _MIB, max(32 * _MIB, 6 * block_bytes + 16 * _MIB))

        a2 = a_flat.reshape(rows, lanes)
        b2 = b_flat.reshape(rows, lanes)

        out2 = pl.pallas_call(
            _add_kernel,
            out_shape=jax.ShapeDtypeStruct((rows, lanes), dtype),
            grid_spec=pltpu.PrefetchScalarGridSpec(
                num_scalar_prefetch=0,
                grid=grid,
                in_specs=[
                    pl.BlockSpec((block_rows, lanes), lambda i: (i, 0)),
                    pl.BlockSpec((block_rows, lanes), lambda i: (i, 0)),
                ],
                out_specs=pl.BlockSpec((block_rows, lanes), lambda i: (i, 0)),
            ),
            compiler_params=pltpu.CompilerParams(
                dimension_semantics=_grid_semantics(grid[0]),
                vmem_limit_bytes=vmem_limit,
            ),
            cost_estimate=cost,
        )(a2, b2)
        return out2.reshape(orig_shape)

    # ---------------- ragged fallback: 1-D flat streaming, no pad/slice ------
    # Blocks are a multiple of 1024 elements (8*128); the ragged boundary block
    # is masked by Pallas, so no padding or output slicing is ever materialized.
    # ~512 KiB/operand blocks keep VMEM use modest even under worst-case
    # sublane padding of 1-D layouts.
    block = max(1024, ((512 * 1024) // itemsize) // 1024 * 1024)
    if n <= block:
        block_n = n                    # single full-array block
        grid = (1,)
    else:
        block_n = block
        grid = (pl.cdiv(n, block_n),)

    vmem_limit = min(48 * _MIB, max(32 * _MIB, 6 * 8 * block_n * itemsize + 16 * _MIB))

    out_flat = pl.pallas_call(
        _add_kernel,
        out_shape=jax.ShapeDtypeStruct((n,), dtype),
        grid_spec=pltpu.PrefetchScalarGridSpec(
            num_scalar_prefetch=0,
            grid=grid,
            in_specs=[
                pl.BlockSpec((block_n,), lambda i: (i,)),
                pl.BlockSpec((block_n,), lambda i: (i,)),
            ],
            out_specs=pl.BlockSpec((block_n,), lambda i: (i,)),
        ),
        compiler_params=pltpu.CompilerParams(
            dimension_semantics=_grid_semantics(grid[0]),
            vmem_limit_bytes=vmem_limit,
        ),
        cost_estimate=cost,
    )(a_flat, b_flat)
    return out_flat.reshape(orig_shape)


# jit so the surrounding (metadata-only) reshapes fuse and the wrapper adds no
# extra HBM traffic; all branching above is on static shape/dtype/device info.
pallas_add = jax.jit(_pallas_add_impl)


def add_module_forward(X):
    """Mirror of Add.forward: add the first two tensors from the list."""
    assert len(X) >= 2
    return pallas_add(X[0], X[1])


if __name__ == "__main__":
    key = jax.random.PRNGKey(0)
    k0, k1, k2, k3, k4, k5, k6 = jax.random.split(key, 7)

    # --- primary check: small NCHW shape (lane-dense single-block path) ---
    shape = (2, 4, 16, 16)
    x0 = jax.random.normal(k0, shape, dtype=jnp.float32)
    x1 = jax.random.normal(k1, shape, dtype=jnp.float32)
    x2 = jax.random.normal(k2, shape, dtype=jnp.float32)  # extra tensor, ignored

    out = add_module_forward([x0, x1, x2])
    jax.block_until_ready(out)
    ref = x0 + x1
    assert out.shape == ref.shape and out.dtype == ref.dtype
    assert jnp.allclose(out, ref, atol=1e-6, rtol=1e-6)

    # --- secondary check: lane-aligned tiled path (zero-copy, multi-step grid) ---
    y0 = jax.random.normal(k3, (8, 64, 64, 64), dtype=jnp.float32)
    y1 = jax.random.normal(k4, (8, 64, 64, 64), dtype=jnp.float32)
    out_big = pallas_add(y0, y1)
    jax.block_until_ready(out_big)
    assert jnp.allclose(out_big, y0 + y1, atol=1e-6, rtol=1e-6)

    # --- secondary check: ragged size -> 1-D streaming fallback (no pad/slice) ---
    z0 = jax.random.normal(k5, (1100, 1100), dtype=jnp.float32)
    z1 = jax.random.normal(k6, (1100, 1100), dtype=jnp.float32)
    out_rag = pallas_add(z0, z1)
    jax.block_until_ready(out_rag)
    assert jnp.allclose(out_rag, z0 + z1, atol=1e-6, rtol=1e-6)

    print("KERNEL_OK")
</pallas_src>

<mosaic_0001>
module attributes {stable_mosaic.version = 11 : i64} {
  func.func @_add_kernel(%arg0: i32, %arg1: memref<2x1024xf32, #tpu.memory_space<vmem>>, %arg2: memref<2x1024xf32, #tpu.memory_space<vmem>>, %arg3: memref<2x1024xf32, #tpu.memory_space<vmem>>) attributes {dimension_semantics = [#tpu.dimension_semantics<parallel>], iteration_bounds = array<i64: 1>, scalar_prefetch = 0 : i64, scratch_operands = 0 : i64, tpu.core_type = #tpu.core_type<tc>, window_params = [{transform_indices = @transform_0, window_bounds = array<i64: 2, 1024>}, {transform_indices = @transform_1, window_bounds = array<i64: 2, 1024>}, {transform_indices = @transform_2, window_bounds = array<i64: 2, 1024>}]} {
    %c0 = arith.constant 0 : index
    %c0_0 = arith.constant 0 : index
    %0 = vector.load %arg1[%c0, %c0_0] : memref<2x1024xf32, #tpu.memory_space<vmem>>, vector<2x1024xf32>
    %c0_1 = arith.constant 0 : index
    %c0_2 = arith.constant 0 : index
    %1 = vector.load %arg2[%c0_1, %c0_2] : memref<2x1024xf32, #tpu.memory_space<vmem>>, vector<2x1024xf32>
    %2 = arith.addf %0, %1 : vector<2x1024xf32>
    %c0_3 = arith.constant 0 : index
    %c0_4 = arith.constant 0 : index
    %3 = vector.load %arg3[%c0_3, %c0_4] : memref<2x1024xf32, #tpu.memory_space<vmem>>, vector<2x1024xf32>
    tpu.vector_store %arg3[%c0_3, %c0_4], %2 {strides = array<i32>} : memref<2x1024xf32, #tpu.memory_space<vmem>>, vector<2x1024xf32>,
    return
  }
  func.func @transform_0(%arg0: i32) -> (i32, i32) {
    %c0_i32 = arith.constant 0 : i32
    %c0_i32_0 = arith.constant 0 : i32
    return %arg0, %c0_i32 : i32, i32
  }
  func.func @transform_1(%arg0: i32) -> (i32, i32) {
    %c0_i32 = arith.constant 0 : i32
    %c0_i32_0 = arith.constant 0 : i32
    return %arg0, %c0_i32 : i32, i32
  }
  func.func @transform_2(%arg0: i32) -> (i32, i32) {
    %c0_i32 = arith.constant 0 : i32
    %c0_i32_0 = arith.constant 0 : i32
    return %arg0, %c0_i32 : i32, i32
  }
}

</mosaic_0001>

<llo_original>
// kernel: _pallas_add_impl.1
$region0: #{_pallas_add_impl.1}
  #allocation0 [shape = 'u32[]', space=smem, size = 0x4, offset = 0x4, fixed_abs, tag = 'smem constant byte address 0x4 - core index']
  #allocation1 [shape = 'u32[144,128]{1,0:T(1,128)}', space=vmem, size = 0x12000, scoped, tag = 'internal scratch']
  %s0 = inlined_call_operand.vmem [shape: f32[2,1024], index: 0, kind: input, shape index: {}]
  %s1 = inlined_call_operand.vmem [shape: f32[2,1024], index: 1, kind: input, shape index: {}]
  %s2 = inlined_call_operand.vmem [shape: f32[2,1024], index: 2, kind: output, shape index: {}]
  %s3 = sld [smem:[#allocation0]]
  $region18: #{_pallas_add_impl.1} parent=0
    _
  %s5 = ssub.s32 1, %s3
  %s6 = scalar_select 0, %s5, %s3
  // Predicated region
  $region2: #{_pallas_add_impl.1} parent=0 // pred_check
    _
  $region3: #{_pallas_add_impl.1} parent=0 // pred_check_branch
    %8 = sbr.rel (0) target = $region5
  $region4: #{_pallas_add_impl.1} parent=0 // pred_region
    _
  $region5: #{_pallas_add_impl.1} parent=0 // pred_fallthru
    _
  // Predicated region
  $region6: #{_pallas_add_impl.1} parent=0 // pred_check
    _
  $region7: #{_pallas_add_impl.1} parent=0 // pred_check_branch
    %10 = sbr.rel (0) target = $region9
  $region8: #{_pallas_add_impl.1} parent=0 // pred_region
    _
  $region9: #{_pallas_add_impl.1} parent=0 // pred_fallthru
    _
  %v11 = vld [vmem:[%s0] sm:$0xff]
  %v12 = vld [vmem:[%s0 + $0x8] sm:$0xff]
  %v13 = vld [vmem:[%s1] sm:$0xff]
  %v14 = vld [vmem:[%s1 + $0x8] sm:$0xff]
  %v15 = vadd.f32 %v11, %v13
  %v16 = vadd.f32 %v12, %v14
  %17 = vst [vmem:[%s2] sm:$0xff] %v15
  %18 = vst [vmem:[%s2 + $0x8] sm:$0xff] %v16
  // Predicated region
  $region10: #{_pallas_add_impl.1} parent=0 // pred_check
    _
  $region11: #{_pallas_add_impl.1} parent=0 // pred_check_branch
    %20 = sbr.rel (0) target = $region13
  $region12: #{_pallas_add_impl.1} parent=0 // pred_region
    _
  $region13: #{_pallas_add_impl.1} parent=0 // pred_fallthru
    _
  // Predicated region
  $region14: #{_pallas_add_impl.1} parent=0 // pred_check
    _
  $region15: #{_pallas_add_impl.1} parent=0 // pred_check_branch
    %22 = sbr.rel (0) target = $region17
  $region16: #{_pallas_add_impl.1} parent=0 // pred_region
    _
  $region17: #{_pallas_add_impl.1} parent=0 // pred_fallthru
    _

</llo_original>
